<compile_context>
chip_gen: v7x
topology: tpu7x:2x2x1
jax: 0.10.0
libtpu: 0.0.40
codegen_flags: <defaults>
</compile_context>

<pallas_src>
import functools
import math

import jax
import jax.numpy as jnp
from jax.experimental import pallas as pl
from jax.experimental.pallas import tpu as pltpu


def _pdmlp_kernel(x_ref, w1_ref, b1_ref, pe_ref, w2_ref, b2_ref, o_ref, *, batch, seq):
    """Single grid step — processes the whole (B*S) problem.

    x_ref  : (B*S, D_in)    bf16
    w1_ref : (D_in, H)      bf16
    b1_ref : (1, H)         f32
    pe_ref : (S, H)         f32    (rows 0..S-1 of the positional-encoding buffer)
    w2_ref : (H, D_pad)     bf16   (fc2 weight, lane-padded to a 128 multiple)
    b2_ref : (1, D_pad)     f32
    o_ref  : (S, B*D_pad)   f32    (permuted, lane-dense output slab)
    """
    # fc1 over all B*S rows at once: one MXU matmul, bf16 inputs, f32 accumulate.
    h = jnp.dot(x_ref[...], w1_ref[...], preferred_element_type=jnp.float32)
    h = jnp.maximum(h + b1_ref[...], 0.0)               # bias + ReLU in f32

    pe = pe_ref[...]                                     # (S, H) f32
    w2 = w2_ref[...]                                     # (H, D_pad) bf16
    b2 = b2_ref[...]                                     # (1, D_pad) f32
    d_pad = w2.shape[-1]

    # Per-batch pe add + fc2, written straight into the permuted (seq-major) output
    # layout: element (s, b*D_pad + d) == torch output[s, b, d].  `batch` is a small
    # static python int, so this unrolls; all slice offsets are 8/128 aligned.
    for b in range(batch):
        hb = h[b * seq:(b + 1) * seq, :] + pe            # (S, H) f32
        ob = jnp.dot(hb.astype(w2.dtype), w2, preferred_element_type=jnp.float32)
        ob = ob + b2                                     # (S, D_pad) f32
        o_ref[:, b * d_pad:(b + 1) * d_pad] = ob.astype(o_ref.dtype)


def make_positional_encoding(hidden_size: int, max_len: int = 5000) -> jnp.ndarray:
    """Same construction as the PyTorch PositionalEncoding buffer."""
    position = jnp.arange(max_len, dtype=jnp.float32)[:, None]           # (max_len, 1)
    div_term = jnp.exp(
        jnp.arange(0, hidden_size, 2, dtype=jnp.float32)
        * (-math.log(10000.0) / hidden_size))                            # (H/2,)
    angles = position * div_term                                         # (max_len, H/2)
    pe = jnp.zeros((max_len, hidden_size), dtype=jnp.float32)
    pe = pe.at[:, 0::2].set(jnp.sin(angles))
    pe = pe.at[:, 1::2].set(jnp.cos(angles))
    return pe


@jax.jit
def pdmlp_forward(x, w1, b1, w2, b2, pe_full):
    """x: (B, S, D_in). Returns (S, B, D_out) like the torch module."""
    B, S, D_in = x.shape
    H = w1.shape[1]
    D_out = w2.shape[1]
    D_pad = ((D_out + 127) // 128) * 128                 # lane-dense output width

    # bf16 MXU operands (accumulation stays f32 inside the kernel).
    x_flat = x.reshape(B * S, D_in).astype(jnp.bfloat16)  # contiguous reshape: free
    w1_b = w1.astype(jnp.bfloat16)
    if D_pad != D_out:
        w2_p = jnp.pad(w2, ((0, 0), (0, D_pad - D_out)))
        b2_p = jnp.pad(b2, (0, D_pad - D_out))
    else:
        w2_p, b2_p = w2, b2
    w2_b = w2_p.astype(jnp.bfloat16)
    b1_2d = b1.reshape(1, H).astype(jnp.float32)
    b2_2d = b2_p.reshape(1, D_pad).astype(jnp.float32)

    # pe[:S] is pulled straight out of the full buffer by the BlockSpec DMA when S
    # satisfies the (8, ...) sublane tiling rule; otherwise pre-slice statically.
    if S % 8 == 0 or S == pe_full.shape[0]:
        pe_in = pe_full
    else:
        pe_in = pe_full[:S]

    flops = 2 * B * S * (D_in * H + H * D_pad)
    bytes_accessed = (x_flat.size * 2 + w1_b.size * 2 + b1_2d.size * 4
                      + S * H * 4 + w2_b.size * 2 + b2_2d.size * 4
                      + S * B * D_pad * 4)

    out = pl.pallas_call(
        functools.partial(_pdmlp_kernel, batch=B, seq=S),
        out_shape=jax.ShapeDtypeStruct((S, B * D_pad), jnp.float32),
        grid=(1,),
        in_specs=[
            pl.BlockSpec((B * S, D_in), lambda i: (0, 0)),   # x, flattened rows
            pl.BlockSpec((D_in, H), lambda i: (0, 0)),       # W1
            pl.BlockSpec((1, H), lambda i: (0, 0)),          # b1
            pl.BlockSpec((S, H), lambda i: (0, 0)),          # pe[:S] (slice via DMA)
            pl.BlockSpec((H, D_pad), lambda i: (0, 0)),      # W2 (padded)
            pl.BlockSpec((1, D_pad), lambda i: (0, 0)),      # b2 (padded)
        ],
        out_specs=pl.BlockSpec((S, B * D_pad), lambda i: (0, 0)),
        compiler_params=pltpu.CompilerParams(
            dimension_semantics=("arbitrary",)),             # tiny kernel: no TC split
        cost_estimate=pl.CostEstimate(
            flops=flops, transcendentals=0, bytes_accessed=bytes_accessed),
    )(x_flat, w1_b, b1_2d, pe_in, w2_b, b2_2d)

    # (S, B*D_pad) -> (S, B, D_pad): contiguous reshape (no data movement); then drop
    # the lane padding to recover the exact torch output shape (S, B, D_out).
    out = out.reshape(S, B, D_pad)
    if D_pad != D_out:
        out = out[:, :, :D_out]
    return out


def reference_forward(x, w1, b1, w2, b2, pe_full):
    """Pure-JAX reference with the same bf16-operand / f32-accumulate matmul recipe."""
    xb = x.astype(jnp.bfloat16)
    w1b = w1.astype(jnp.bfloat16)
    w2b = w2.astype(jnp.bfloat16)
    h = jnp.einsum("bsd,dh->bsh", xb, w1b, preferred_element_type=jnp.float32)
    h = jax.nn.relu(h + b1)
    h = h + pe_full[: x.shape[1], :][None, :, :]
    o = jnp.einsum("bsh,ho->bso", h.astype(jnp.bfloat16), w2b,
                   preferred_element_type=jnp.float32) + b2
    return jnp.transpose(o, (1, 0, 2))


if __name__ == "__main__":
    # Small shapes consistent with the module.
    B, S = 2, 8
    INPUT_SIZE, HIDDEN_SIZE, OUTPUT_SIZE = 16, 32, 8

    key = jax.random.PRNGKey(0)
    kx, kw1, kb1, kw2, kb2 = jax.random.split(key, 5)

    x = jax.random.normal(kx, (B, S, INPUT_SIZE), dtype=jnp.float32)

    # Deterministic parameter init (uniform like torch Linear default, seeded).
    lim1 = 1.0 / math.sqrt(INPUT_SIZE)
    lim2 = 1.0 / math.sqrt(HIDDEN_SIZE)
    # Stored as (in, out), i.e. already transposed relative to torch's (out, in) weight.
    w1 = jax.random.uniform(kw1, (INPUT_SIZE, HIDDEN_SIZE), jnp.float32, -lim1, lim1)
    b1 = jax.random.uniform(kb1, (HIDDEN_SIZE,), jnp.float32, -lim1, lim1)
    w2 = jax.random.uniform(kw2, (HIDDEN_SIZE, OUTPUT_SIZE), jnp.float32, -lim2, lim2)
    b2 = jax.random.uniform(kb2, (OUTPUT_SIZE,), jnp.float32, -lim2, lim2)

    pe_full = make_positional_encoding(HIDDEN_SIZE, max_len=5000)

    out = pdmlp_forward(x, w1, b1, w2, b2, pe_full)
    out = jax.block_until_ready(out)

    ref = reference_forward(x, w1, b1, w2, b2, pe_full)
    assert out.shape == (S, B, OUTPUT_SIZE), out.shape
    # Tolerance accounts for bf16 MXU operands (f32 accumulation) and minor
    # accumulation-order differences between the kernel and the XLA reference.
    assert jnp.allclose(out, ref, atol=5e-3, rtol=5e-3), "mismatch vs. reference"

    print("KERNEL_OK")
</pallas_src>

<mosaic_0001>
module attributes {stable_mosaic.version = 11 : i64} {
  func.func @_pdmlp_kernel(%arg0: i32, %arg1: memref<16x16xbf16, #tpu.memory_space<vmem>>, %arg2: memref<16x32xbf16, #tpu.memory_space<vmem>>, %arg3: memref<1x32xf32, #tpu.memory_space<vmem>>, %arg4: memref<8x32xf32, #tpu.memory_space<vmem>>, %arg5: memref<32x128xbf16, #tpu.memory_space<vmem>>, %arg6: memref<1x128xf32, #tpu.memory_space<vmem>>, %arg7: memref<8x256xf32, #tpu.memory_space<vmem>>) attributes {dimension_semantics = [#tpu.dimension_semantics<arbitrary>], iteration_bounds = array<i64: 1>, scalar_prefetch = 0 : i64, scratch_operands = 0 : i64, tpu.core_type = #tpu.core_type<tc>, window_params = [{pipeline_mode = #tpu.pipeline_mode<synchronous>, transform_indices = @transform_0, window_bounds = array<i64: 16, 16>}, {pipeline_mode = #tpu.pipeline_mode<synchronous>, transform_indices = @transform_1, window_bounds = array<i64: 16, 32>}, {pipeline_mode = #tpu.pipeline_mode<synchronous>, transform_indices = @transform_2, window_bounds = array<i64: 1, 32>}, {transform_indices = @transform_3, window_bounds = array<i64: 8, 32>}, {pipeline_mode = #tpu.pipeline_mode<synchronous>, transform_indices = @transform_4, window_bounds = array<i64: 32, 128>}, {pipeline_mode = #tpu.pipeline_mode<synchronous>, transform_indices = @transform_5, window_bounds = array<i64: 1, 128>}, {pipeline_mode = #tpu.pipeline_mode<synchronous>, transform_indices = @transform_6, window_bounds = array<i64: 8, 256>}]} {
    %c0 = arith.constant 0 : index
    %c0_0 = arith.constant 0 : index
    %0 = vector.load %arg1[%c0, %c0_0] : memref<16x16xbf16, #tpu.memory_space<vmem>>, vector<16x16xbf16>
    %c0_1 = arith.constant 0 : index
    %c0_2 = arith.constant 0 : index
    %1 = vector.load %arg2[%c0_1, %c0_2] : memref<16x32xbf16, #tpu.memory_space<vmem>>, vector<16x32xbf16>
    %cst = arith.constant dense<0.000000e+00> : vector<16x32xf32>
    %2 = tpu.matmul %0, %1, %cst {dimension_numbers = #tpu.dot_dimension_numbers<[1], [0], [0], [1], [0, 0, 1, 1], [], []>} : vector<16x16xbf16>, vector<16x32xbf16>, vector<16x32xf32> -> vector<16x32xf32>
    %c0_3 = arith.constant 0 : index
    %c0_4 = arith.constant 0 : index
    %3 = vector.load %arg3[%c0_3, %c0_4] : memref<1x32xf32, #tpu.memory_space<vmem>>, vector<1x32xf32>
    %4 = vector.broadcast %3 : vector<1x32xf32> to vector<16x32xf32>
    %5 = arith.addf %2, %4 : vector<16x32xf32>
    %cst_5 = arith.constant 0.000000e+00 : f32
    %6 = vector.broadcast %cst_5 : f32 to vector<16x32xf32>
    %7 = arith.maximumf %5, %6 : vector<16x32xf32>
    %c0_6 = arith.constant 0 : index
    %c0_7 = arith.constant 0 : index
    %8 = vector.load %arg4[%c0_6, %c0_7] : memref<8x32xf32, #tpu.memory_space<vmem>>, vector<8x32xf32>
    %c0_8 = arith.constant 0 : index
    %c0_9 = arith.constant 0 : index
    %9 = vector.load %arg5[%c0_8, %c0_9] : memref<32x128xbf16, #tpu.memory_space<vmem>>, vector<32x128xbf16>
    %c0_10 = arith.constant 0 : index
    %c0_11 = arith.constant 0 : index
    %10 = vector.load %arg6[%c0_10, %c0_11] : memref<1x128xf32, #tpu.memory_space<vmem>>, vector<1x128xf32>
    %11 = vector.extract_strided_slice %7 {offsets = [0, 0], sizes = [8, 32], strides = [1, 1]} : vector<16x32xf32> to vector<8x32xf32>
    %12 = arith.addf %11, %8 : vector<8x32xf32>
    %13 = arith.truncf %12 : vector<8x32xf32> to vector<8x32xbf16>
    %cst_12 = arith.constant dense<0.000000e+00> : vector<8x128xf32>
    %14 = tpu.matmul %13, %9, %cst_12 {dimension_numbers = #tpu.dot_dimension_numbers<[1], [0], [0], [1], [0, 0, 1, 1], [], []>} : vector<8x32xbf16>, vector<32x128xbf16>, vector<8x128xf32> -> vector<8x128xf32>
    %15 = vector.broadcast %10 : vector<1x128xf32> to vector<8x128xf32>
    %16 = arith.addf %14, %15 : vector<8x128xf32>
    %c0_13 = arith.constant 0 : index
    %c0_14 = arith.constant 0 : index
    %17 = vector.load %arg7[%c0_13, %c0_14] : memref<8x256xf32, #tpu.memory_space<vmem>>, vector<8x128xf32>
    tpu.vector_store %arg7[%c0_13, %c0_14], %16 {strides = array<i32>} : memref<8x256xf32, #tpu.memory_space<vmem>>, vector<8x128xf32>,
    %18 = vector.extract_strided_slice %7 {offsets = [8, 0], sizes = [8, 32], strides = [1, 1]} : vector<16x32xf32> to vector<8x32xf32>
    %19 = arith.addf %18, %8 : vector<8x32xf32>
    %20 = arith.truncf %19 : vector<8x32xf32> to vector<8x32xbf16>
    %cst_15 = arith.constant dense<0.000000e+00> : vector<8x128xf32>
    %21 = tpu.matmul %20, %9, %cst_15 {dimension_numbers = #tpu.dot_dimension_numbers<[1], [0], [0], [1], [0, 0, 1, 1], [], []>} : vector<8x32xbf16>, vector<32x128xbf16>, vector<8x128xf32> -> vector<8x128xf32>
    %22 = vector.broadcast %10 : vector<1x128xf32> to vector<8x128xf32>
    %23 = arith.addf %21, %22 : vector<8x128xf32>
    %c0_16 = arith.constant 0 : index
    %c128 = arith.constant 128 : index
    %24 = vector.load %arg7[%c0_16, %c128] : memref<8x256xf32, #tpu.memory_space<vmem>>, vector<8x128xf32>
    tpu.vector_store %arg7[%c0_16, %c128], %23 {strides = array<i32>} : memref<8x256xf32, #tpu.memory_space<vmem>>, vector<8x128xf32>,
    return
  }
  func.func @transform_0(%arg0: i32) -> (i32, i32) {
    %c0_i32 = arith.constant 0 : i32
    %c0_i32_0 = arith.constant 0 : i32
    %c0_i32_1 = arith.constant 0 : i32
    return %c0_i32, %c0_i32_0 : i32, i32
  }
  func.func @transform_1(%arg0: i32) -> (i32, i32) {
    %c0_i32 = arith.constant 0 : i32
    %c0_i32_0 = arith.constant 0 : i32
    %c0_i32_1 = arith.constant 0 : i32
    return %c0_i32, %c0_i32_0 : i32, i32
  }
  func.func @transform_2(%arg0: i32) -> (i32, i32) {
    %c0_i32 = arith.constant 0 : i32
    %c0_i32_0 = arith.constant 0 : i32
    %c0_i32_1 = arith.constant 0 : i32
    return %c0_i32, %c0_i32_0 : i32, i32
  }
  func.func @transform_3(%arg0: i32) -> (i32, i32) {
    %c0_i32 = arith.constant 0 : i32
    %c0_i32_0 = arith.constant 0 : i32
    %c0_i32_1 = arith.constant 0 : i32
    return %c0_i32, %c0_i32_0 : i32, i32
  }
  func.func @transform_4(%arg0: i32) -> (i32, i32) {
    %c0_i32 = arith.constant 0 : i32
    %c0_i32_0 = arith.constant 0 : i32
    %c0_i32_1 = arith.constant 0 : i32
    return %c0_i32, %c0_i32_0 : i32, i32
  }
  func.func @transform_5(%arg0: i32) -> (i32, i32) {
    %c0_i32 = arith.constant 0 : i32
    %c0_i32_0 = arith.constant 0 : i32
    %c0_i32_1 = arith.constant 0 : i32
    return %c0_i32, %c0_i32_0 : i32, i32
  }
  func.func @transform_6(%arg0: i32) -> (i32, i32) {
    %c0_i32 = arith.constant 0 : i32
    %c0_i32_0 = arith.constant 0 : i32
    %c0_i32_1 = arith.constant 0 : i32
    return %c0_i32, %c0_i32_0 : i32, i32
  }
}

</mosaic_0001>

<llo_original>
// kernel: pdmlp_forward.1
$region0: #{pdmlp_forward.1}
  #allocation0 [shape = 'u32[]', space=smem, size = 0x4, offset = 0x4, fixed_abs, tag = 'smem constant byte address 0x4 - core index']
  #allocation1 [shape = 'u32[144,128]{1,0:T(1,128)}', space=vmem, size = 0x12000, scoped, tag = 'internal scratch']
  %s0 = inlined_call_operand.vmem [shape: bf16[16,16], index: 0, kind: input, shape index: {}]
  %s1 = inlined_call_operand.vmem [shape: bf16[16,32], index: 1, kind: input, shape index: {}]
  %s2 = inlined_call_operand.vmem [shape: f32[1,32], index: 2, kind: input, shape index: {}]
  %s3 = inlined_call_operand.vmem [shape: f32[5000,32], index: 3, kind: input, shape index: {}]
  %s4 = inlined_call_operand.vmem [shape: bf16[32,128], index: 4, kind: input, shape index: {}]
  %s5 = inlined_call_operand.vmem [shape: f32[1,128], index: 5, kind: input, shape index: {}]
  %s6 = inlined_call_operand.vmem [shape: f32[8,256], index: 6, kind: output, shape index: {}]
  %s7 = sld [smem:[#allocation0]]
  $region34: #{pdmlp_forward.1} parent=0
    _
  %s9 = ssub.s32 1, %s7
  %s10 = scalar_select 0, %s9, %s7
  // Predicated region
  $region2: #{pdmlp_forward.1} parent=0 // pred_check
    _
  $region3: #{pdmlp_forward.1} parent=0 // pred_check_branch
    %12 = sbr.rel (0) target = $region5
  $region4: #{pdmlp_forward.1} parent=0 // pred_region
    _
  $region5: #{pdmlp_forward.1} parent=0 // pred_fallthru
    _
  // Predicated region
  $region6: #{pdmlp_forward.1} parent=0 // pred_check
    _
  $region7: #{pdmlp_forward.1} parent=0 // pred_check_branch
    %14 = sbr.rel (0) target = $region9
  $region8: #{pdmlp_forward.1} parent=0 // pred_region
    _
  $region9: #{pdmlp_forward.1} parent=0 // pred_fallthru
    _
  // Predicated region
  $region10: #{pdmlp_forward.1} parent=0 // pred_check
    _
  $region11: #{pdmlp_forward.1} parent=0 // pred_check_branch
    %16 = sbr.rel (0) target = $region13
  $region12: #{pdmlp_forward.1} parent=0 // pred_region
    _
  $region13: #{pdmlp_forward.1} parent=0 // pred_fallthru
    _
  // Predicated region
  $region14: #{pdmlp_forward.1} parent=0 // pred_check
    _
  $region15: #{pdmlp_forward.1} parent=0 // pred_check_branch
    %18 = sbr.rel (0) target = $region17
  $region16: #{pdmlp_forward.1} parent=0 // pred_region
    _
  $region17: #{pdmlp_forward.1} parent=0 // pred_fallthru
    _
  // Predicated region
  $region18: #{pdmlp_forward.1} parent=0 // pred_check
    _
  $region19: #{pdmlp_forward.1} parent=0 // pred_check_branch
    %20 = sbr.rel (0) target = $region21
  $region20: #{pdmlp_forward.1} parent=0 // pred_region
    _
  $region21: #{pdmlp_forward.1} parent=0 // pred_fallthru
    _
  // Predicated region
  $region22: #{pdmlp_forward.1} parent=0 // pred_check
    _
  $region23: #{pdmlp_forward.1} parent=0 // pred_check_branch
    %22 = sbr.rel (0) target = $region25
  $region24: #{pdmlp_forward.1} parent=0 // pred_region
    _
  $region25: #{pdmlp_forward.1} parent=0 // pred_fallthru
    _
  %v24 = vld [vmem:[%s0] sm:$0xf]
  %v25 = vld [vmem:[%s0 + $0x4] sm:$0xf]
  %v26 = vld [vmem:[%s1] sm:$0xf]
  %v27 = vld [vmem:[%s1 + $0x4] sm:$0xf]
  %v28 = vld [vmem:[%s2] sm:$0x1]
  %v30 = vlaneseq
  %v31 = vshrl.u32 %v30, 7
  %v32 = vsub.s32 0, %v31
  %v33 = vrot.slane %v28, %v32
  %v37 = vunpack.c.l.b16 %v24
  %v38 = vunpack.c.l.b16 %v25
  %v39 = vpack.c.b16 %v38, %v37
  %v42 = vunpack.c.l.b16 %v26
  %v43 = vunpack.c.l.b16 %v27
  %v44 = vpack.c.b16 %v43, %v42
  %vm46 = vcmask 130048
  %v48 = vsel %vm46, %v39, 0
  %50 = vmatprep.subr.bf16.mxu0 0
  %51 = vmatpush1.bf16.msra.mxu0 %v44
  %52 = vmatprep.subr.bf16.mxu0 0
  %53 = vmatpush1.bf16.msra.mxu0 0
  %54 = vmatprep.subr.bf16.mxu0 0
  %55 = vmatpush1.bf16.msra.mxu0 0
  %56 = vmatprep.subr.bf16.mxu0 0
  %57 = vmatpush1.bf16.msra.mxu0 0
  %58 = vmatprep.subr.bf16.mxu0 0
  %59 = vmatpush1.bf16.msra.mxu0 0
  %60 = vmatprep.subr.bf16.mxu0 0
  %61 = vmatpush1.bf16.msra.mxu0 0
  %62 = vmatprep.subr.bf16.mxu0 0
  %63 = vmatpush1.bf16.msra.mxu0 0
  %64 = vmatprep.subr.bf16.mxu0 0
  %65 = vmatpush1.bf16.msra.mxu0 0
  %66 = vmatprep.subr.bf16.mxu0 0
  %67 = vmatpush1.bf16.msra.mxu0 0
  %68 = vmatprep.subr.bf16.mxu0 0
  %69 = vmatpush1.bf16.msra.mxu0 0
  %70 = vmatprep.subr.bf16.mxu0 0
  %71 = vmatpush1.bf16.msra.mxu0 0
  %72 = vmatprep.subr.bf16.mxu0 0
  %73 = vmatpush1.bf16.msra.mxu0 0
  %74 = vmatprep.subr.bf16.mxu0 0
  %75 = vmatpush1.bf16.msra.mxu0 0
  %76 = vmatprep.subr.bf16.mxu0 0
  %77 = vmatpush1.bf16.msra.mxu0 0
  %78 = vmatprep.subr.bf16.mxu0 0
  %79 = vmatpush1.bf16.msra.mxu0 0
  %80 = vmatprep.subr.bf16.mxu0 0
  %81 = vmatpush1.bf16.msra.mxu0 0
  %82 = vmatprep.mubr.bf16.mxu0 0
  %83 = vmatmul.mubr.bf16.gmra.mrb[0].mxu0 %v48
  %v84 = vpop.f32.mrb[0].mxu0
  %v85 = vadd.f32 %v33, %v84
  %v86 = vpop.f32.mrb[0].mxu0
  %v87 = vpop.f32.mrb[0].mxu0
  %v88 = vadd.f32 %v33, %v87
  %v89 = vpop.f32.mrb[0].mxu0
  %90 = vdwg.mxu0
  %v91 = vmax.f32 %v85, 0.0
  %v92 = vmax.f32 %v88, 0.0
  %v93 = vld [vmem:[%s3] sm:$0xff]
  %v94 = vld [vmem:[%s4] sm:$0xf]
  %v95 = vld [vmem:[%s4 + $0x4] sm:$0xf]
  %v96 = vld [vmem:[%s4 + $0x8] sm:$0xf]
  %v97 = vld [vmem:[%s4 + $0xc] sm:$0xf]
  %v98 = vld [vmem:[%s5] sm:$0x1]
  %v99 = vadd.f32 %v91, %v93
  %v100 = vpack.c.bf16 %v99, %v99
  %v102 = vlaneseq
  %v103 = vshrl.u32 %v102, 7
  %v104 = vsub.s32 0, %v103
  %v105 = vrot.slane %v98, %v104
  %v111 = vunpack.c.l.b16 %v94
  %v112 = vunpack.c.l.b16 %v95
  %v113 = vunpack.c.l.b16 %v96
  %v114 = vunpack.c.l.b16 %v97
  %v115 = vpack.c.b16 %v112, %v111
  %v116 = vpack.c.b16 %v114, %v113
  %vm119 = vcmask 261120
  %v121 = vsel %vm119, %v100, 0
  %123 = vmatprep.subr.bf16.mxu0 0
  %124 = vmatpush1.bf16.msra.mxu0 %v115
  %125 = vmatprep.subr.bf16.mxu0 0
  %126 = vmatpush1.bf16.msra.mxu0 %v116
  %127 = vmatprep.subr.bf16.mxu0 0
  %128 = vmatpush1.bf16.msra.mxu0 0
  %129 = vmatprep.subr.bf16.mxu0 0
  %130 = vmatpush1.bf16.msra.mxu0 0
  %131 = vmatprep.subr.bf16.mxu0 0
  %132 = vmatpush1.bf16.msra.mxu0 0
  %133 = vmatprep.subr.bf16.mxu0 0
  %134 = vmatpush1.bf16.msra.mxu0 0
  %135 = vmatprep.subr.bf16.mxu0 0
  %136 = vmatpush1.bf16.msra.mxu0 0
  %137 = vmatprep.subr.bf16.mxu0 0
  %138 = vmatpush1.bf16.msra.mxu0 0
  %139 = vmatprep.subr.bf16.mxu0 0
  %140 = vmatpush1.bf16.msra.mxu0 0
  %141 = vmatprep.subr.bf16.mxu0 0
  %142 = vmatpush1.bf16.msra.mxu0 0
  %143 = vmatprep.subr.bf16.mxu0 0
  %144 = vmatpush1.bf16.msra.mxu0 0
  %145 = vmatprep.subr.bf16.mxu0 0
  %146 = vmatpush1.bf16.msra.mxu0 0
  %147 = vmatprep.subr.bf16.mxu0 0
  %148 = vmatpush1.bf16.msra.mxu0 0
  %149 = vmatprep.subr.bf16.mxu0 0
  %150 = vmatpush1.bf16.msra.mxu0 0
  %151 = vmatprep.subr.bf16.mxu0 0
  %152 = vmatpush1.bf16.msra.mxu0 0
  %153 = vmatprep.subr.bf16.mxu0 0
  %154 = vmatpush1.bf16.msra.mxu0 0
  %155 = vmatprep.mubr.bf16.mxu0 0
  %156 = vmatmul.mubr.bf16.gmra.mrb[0].mxu0 %v121
  %v157 = vpop.f32.mrb[0].mxu0
  %v158 = vadd.f32 %v105, %v157
  %v159 = vpop.f32.mrb[0].mxu0
  %v160 = vpop.f32.mrb[0].mxu0
  %v161 = vpop.f32.mrb[0].mxu0
  %162 = vdwg.mxu0
  %163 = vst [vmem:[%s6] sm:$0xff] %v158
  %v164 = vadd.f32 %v92, %v93
  %v165 = vpack.c.bf16 %v164, %v164
  %v167 = vsel %vm119, %v165, 0
  %169 = vmatprep.subr.bf16.mxu0 0
  %170 = vmatpush1.bf16.msra.mxu0 %v115
  %171 = vmatprep.subr.bf16.mxu0 0
  %172 = vmatpush1.bf16.msra.mxu0 %v116
  %173 = vmatprep.subr.bf16.mxu0 0
  %174 = vmatpush1.bf16.msra.mxu0 0
  %175 = vmatprep.subr.bf16.mxu0 0
  %176 = vmatpush1.bf16.msra.mxu0 0
  %177 = vmatprep.subr.bf16.mxu0 0
  %178 = vmatpush1.bf16.msra.mxu0 0
  %179 = vmatprep.subr.bf16.mxu0 0
  %180 = vmatpush1.bf16.msra.mxu0 0
  %181 = vmatprep.subr.bf16.mxu0 0
  %182 = vmatpush1.bf16.msra.mxu0 0
  %183 = vmatprep.subr.bf16.mxu0 0
  %184 = vmatpush1.bf16.msra.mxu0 0
  %185 = vmatprep.subr.bf16.mxu0 0
  %186 = vmatpush1.bf16.msra.mxu0 0
  %187 = vmatprep.subr.bf16.mxu0 0
  %188 = vmatpush1.bf16.msra.mxu0 0
  %189 = vmatprep.subr.bf16.mxu0 0
  %190 = vmatpush1.bf16.msra.mxu0 0
  %191 = vmatprep.subr.bf16.mxu0 0
  %192 = vmatpush1.bf16.msra.mxu0 0
  %193 = vmatprep.subr.bf16.mxu0 0
  %194 = vmatpush1.bf16.msra.mxu0 0
  %195 = vmatprep.subr.bf16.mxu0 0
  %196 = vmatpush1.bf16.msra.mxu0 0
  %197 = vmatprep.subr.bf16.mxu0 0
  %198 = vmatpush1.bf16.msra.mxu0 0
  %199 = vmatprep.subr.bf16.mxu0 0
  %200 = vmatpush1.bf16.msra.mxu0 0
  %201 = vmatprep.mubr.bf16.mxu0 0
  %202 = vmatmul.mubr.bf16.gmra.mrb[0].mxu0 %v167
  %v203 = vpop.f32.mrb[0].mxu0
  %v204 = vadd.f32 %v105, %v203
  %v205 = vpop.f32.mrb[0].mxu0
  %v206 = vpop.f32.mrb[0].mxu0
  %v207 = vpop.f32.mrb[0].mxu0
  %208 = vdwg.mxu0
  %209 = vst [vmem:[%s6 + $0x8] sm:$0xff] %v204
  // Predicated region
  $region26: #{pdmlp_forward.1} parent=0 // pred_check
    _
  $region27: #{pdmlp_forward.1} parent=0 // pred_check_branch
    %211 = sbr.rel (0) target = $region29
  $region28: #{pdmlp_forward.1} parent=0 // pred_region
    _
  $region29: #{pdmlp_forward.1} parent=0 // pred_fallthru
    _
  // Predicated region
  $region30: #{pdmlp_forward.1} parent=0 // pred_check
    _
  $region31: #{pdmlp_forward.1} parent=0 // pred_check_branch
    %213 = sbr.rel (0) target = $region33
  $region32: #{pdmlp_forward.1} parent=0 // pred_region
    _
  $region33: #{pdmlp_forward.1} parent=0 // pred_fallthru
    _

</llo_original>
